<compile_context>
chip_gen: v7x
topology: tpu7x:2x2x1
jax: 0.10.0
libtpu: 0.0.40
codegen_flags: <defaults>
</compile_context>

<pallas_src>
import jax
import jax.numpy as jnp
from jax import lax
from jax.experimental import pallas as pl
from jax.experimental.pallas import tpu as pltpu


STATE_SIZE = 33
ACTION_SIZE = 4
HIDDEN_SIZES = [400, 300]
H1_PAD = 512   # 400 padded to a multiple of 128
H2_PAD = 384   # 300 padded to a multiple of 128


def critic_kernel(s_ref, a_ref, w1_ref, b1_ref, w2s_ref, w2a_ref, b2_ref,
                  w3_ref, b3_ref, o_ref):
    # Layer 1 + ReLU: (TB, 33) @ (33, 512) + (1, 512).
    # Padded columns of W1/b1 are zero -> relu gives exactly 0 there.
    xs = jnp.dot(s_ref[...], w1_ref[...], preferred_element_type=jnp.float32)
    xs = jnp.maximum(xs + b1_ref[...], 0.0)

    # Layer 2 on concat([xs, action]) + ReLU, concat fused into two matmuls:
    # (TB, 512) @ (512, 384) + (TB, 4) @ (4, 384) + (1, 384)
    h = jnp.dot(xs, w2s_ref[...], preferred_element_type=jnp.float32)
    h = h + jnp.dot(a_ref[...], w2a_ref[...], preferred_element_type=jnp.float32)
    h = jnp.maximum(h + b2_ref[...], 0.0)

    # Output layer as a transposed-contraction matmul so the batch lands on the
    # lane axis and the store is lane-dense:
    #   q_row = W3_row (1, 384) . H (TB, 384)^T  -> (1, TB)
    q_row = lax.dot_general(
        w3_ref[...], h,
        dimension_numbers=(((1,), (1,)), ((), ())),
        preferred_element_type=jnp.float32,
    )
    o_ref[...] = q_row + b3_ref[...]          # (1, TB), unmasked lane-dense vst


def critic_forward(state, action, padded_params, *, tile_b=256):
    """state: (B, 33) f32, action: (B, 4) f32 -> Q: (B, 1) f32."""
    B = state.shape[0]
    (w1, b1, w2s, w2a, b2, w3, b3) = padded_params

    # Tile selection:
    #  * single-tile case: tb == padded_B (any multiple of 8) -> full-array
    #    blocks everywhere, always legal.
    #  * multi-tile case: tb must be a lane multiple (128) so the (1, tb)
    #    output block is lane-dense and tiling-legal.
    b_up8 = max(8, pl.cdiv(B, 8) * 8)
    if b_up8 <= tile_b:
        tb = b_up8
    else:
        tb = max(128, (tile_b // 128) * 128)
    padded_B = pl.cdiv(B, tb) * tb
    if padded_B != B:
        pad = padded_B - B
        state = jnp.pad(state, ((0, pad), (0, 0)))
        action = jnp.pad(action, ((0, pad), (0, 0)))

    grid = (padded_B // tb,)

    row_spec = lambda cols: pl.BlockSpec((tb, cols), lambda i: (i, 0))
    # Weights/biases: full-array blocks with a constant index_map -> loaded
    # once, VMEM-resident across all grid steps.
    const_spec = lambda shape: pl.BlockSpec(shape, lambda i: (0, 0))

    out = pl.pallas_call(
        critic_kernel,
        out_shape=jax.ShapeDtypeStruct((1, padded_B), jnp.float32),
        grid=grid,
        in_specs=[
            row_spec(STATE_SIZE),                 # state   (tb, 33)
            row_spec(ACTION_SIZE),                # action  (tb, 4)
            const_spec((STATE_SIZE, H1_PAD)),     # w1      (33, 512)
            const_spec((1, H1_PAD)),              # b1      (1, 512)
            const_spec((H1_PAD, H2_PAD)),         # w2s     (512, 384)
            const_spec((ACTION_SIZE, H2_PAD)),    # w2a     (4, 384)
            const_spec((1, H2_PAD)),              # b2      (1, 384)
            const_spec((1, H2_PAD)),              # w3 row  (1, 384)
            const_spec((1, 1)),                   # b3      (1, 1)
        ],
        # Lane-dense output slab: one (1, tb) row per grid step.
        out_specs=pl.BlockSpec((1, tb), lambda i: (0, i)),
        compiler_params=pltpu.CompilerParams(
            dimension_semantics=("parallel",),
            vmem_limit_bytes=32 * 1024 * 1024,
        ),
    )(state, action, w1, b1, w2s, w2a, b2, w3, b3)

    return out[0, :B][:, None]


def init_params(key):
    """Unpadded params, mirroring CriticNetwork.reset_parameters().
    Weights stored as (in, out) = transpose of PyTorch nn.Linear layout."""
    h1, h2 = HIDDEN_SIZES
    k1, k2, k3 = jax.random.split(key, 3)
    lim1 = 1.0 / jnp.sqrt(jnp.float32(h1))
    lim2 = 1.0 / jnp.sqrt(jnp.float32(h2))
    w1 = jax.random.uniform(k1, (STATE_SIZE, h1), jnp.float32, -lim1, lim1)
    w2 = jax.random.uniform(k2, (h1 + ACTION_SIZE, h2), jnp.float32, -lim2, lim2)
    w3 = jax.random.uniform(k3, (h2, 1), jnp.float32, -0.003, 0.003)
    b1 = jnp.full((1, h1), 0.1, jnp.float32)
    b2 = jnp.full((1, h2), 0.1, jnp.float32)
    b3 = jnp.full((1, 1), 0.1, jnp.float32)
    return (w1, b1, w2, b2, w3, b3)


def pad_params(params):
    """Zero-pad to lane-dense shapes and split W2 into state/action parts."""
    (w1, b1, w2, b2, w3, b3) = params
    h1, h2 = HIDDEN_SIZES
    w1p = jnp.zeros((STATE_SIZE, H1_PAD), jnp.float32).at[:, :h1].set(w1)
    b1p = jnp.zeros((1, H1_PAD), jnp.float32).at[:, :h1].set(b1)
    w2s = jnp.zeros((H1_PAD, H2_PAD), jnp.float32).at[:h1, :h2].set(w2[:h1, :])
    w2a = jnp.zeros((ACTION_SIZE, H2_PAD), jnp.float32).at[:, :h2].set(w2[h1:, :])
    b2p = jnp.zeros((1, H2_PAD), jnp.float32).at[:, :h2].set(b2)
    # w3 stored as a row vector for the in-kernel transposed-contraction matmul.
    w3p = jnp.zeros((1, H2_PAD), jnp.float32).at[:, :h2].set(w3[:, 0][None, :])
    return (w1p, b1p, w2s, w2a, b2p, w3p, b3)


def reference_forward(state, action, params):
    """Plain-JAX reference with explicit concat (unpadded params)."""
    (w1, b1, w2, b2, w3, b3) = params
    xs = jax.nn.relu(state @ w1 + b1)
    x = jnp.concatenate([xs, action], axis=1)
    x = jax.nn.relu(x @ w2 + b2)
    return x @ w3 + b3


if __name__ == "__main__":
    key = jax.random.PRNGKey(0)
    kp, ks, ka = jax.random.split(key, 3)

    raw_params = init_params(kp)
    params = pad_params(raw_params)

    # Small check (single grid step, full-array blocks).
    B = 8
    state = jax.random.normal(ks, (B, STATE_SIZE), jnp.float32)
    action = jax.random.normal(ka, (B, ACTION_SIZE), jnp.float32)
    q = jax.block_until_ready(critic_forward(state, action, params))
    q_ref = reference_forward(state, action, raw_params)
    assert q.shape == (B, 1)
    assert jnp.allclose(q, q_ref, atol=1e-4, rtol=1e-4), (q, q_ref)

    # Larger, non-multiple batch (exercises grid tiling + batch padding +
    # lane-dense multi-tile output).
    B2 = 300
    ks2, ka2 = jax.random.split(ka)
    state2 = jax.random.normal(ks2, (B2, STATE_SIZE), jnp.float32)
    action2 = jax.random.normal(ka2, (B2, ACTION_SIZE), jnp.float32)
    q2 = jax.block_until_ready(critic_forward(state2, action2, params, tile_b=128))
    q2_ref = reference_forward(state2, action2, raw_params)
    assert q2.shape == (B2, 1)
    assert jnp.allclose(q2, q2_ref, atol=1e-4, rtol=1e-4)

    print("KERNEL_OK")
</pallas_src>

<mosaic_0001>
module attributes {stable_mosaic.version = 11 : i64} {
  func.func @critic_kernel(%arg0: i32, %arg1: memref<8x33xf32, #tpu.memory_space<vmem>>, %arg2: memref<8x4xf32, #tpu.memory_space<vmem>>, %arg3: memref<33x512xf32, #tpu.memory_space<vmem>>, %arg4: memref<1x512xf32, #tpu.memory_space<vmem>>, %arg5: memref<512x384xf32, #tpu.memory_space<vmem>>, %arg6: memref<4x384xf32, #tpu.memory_space<vmem>>, %arg7: memref<1x384xf32, #tpu.memory_space<vmem>>, %arg8: memref<1x384xf32, #tpu.memory_space<vmem>>, %arg9: memref<1x1xf32, #tpu.memory_space<vmem>>, %arg10: memref<1x8xf32, #tpu.memory_space<vmem>>) attributes {dimension_semantics = [#tpu.dimension_semantics<parallel>], iteration_bounds = array<i64: 1>, scalar_prefetch = 0 : i64, scratch_operands = 0 : i64, tpu.core_type = #tpu.core_type<tc>, window_params = [{transform_indices = @transform_0, window_bounds = array<i64: 8, 33>}, {transform_indices = @transform_1, window_bounds = array<i64: 8, 4>}, {pipeline_mode = #tpu.pipeline_mode<synchronous>, transform_indices = @transform_2, window_bounds = array<i64: 33, 512>}, {pipeline_mode = #tpu.pipeline_mode<synchronous>, transform_indices = @transform_3, window_bounds = array<i64: 1, 512>}, {pipeline_mode = #tpu.pipeline_mode<synchronous>, transform_indices = @transform_4, window_bounds = array<i64: 512, 384>}, {pipeline_mode = #tpu.pipeline_mode<synchronous>, transform_indices = @transform_5, window_bounds = array<i64: 4, 384>}, {pipeline_mode = #tpu.pipeline_mode<synchronous>, transform_indices = @transform_6, window_bounds = array<i64: 1, 384>}, {pipeline_mode = #tpu.pipeline_mode<synchronous>, transform_indices = @transform_7, window_bounds = array<i64: 1, 384>}, {pipeline_mode = #tpu.pipeline_mode<synchronous>, transform_indices = @transform_8, window_bounds = array<i64: 1, 1>}, {transform_indices = @transform_9, window_bounds = array<i64: 1, 8>}]} {
    %c0 = arith.constant 0 : index
    %c0_0 = arith.constant 0 : index
    %0 = vector.load %arg1[%c0, %c0_0] : memref<8x33xf32, #tpu.memory_space<vmem>>, vector<8x33xf32>
    %c0_1 = arith.constant 0 : index
    %c0_2 = arith.constant 0 : index
    %1 = vector.load %arg3[%c0_1, %c0_2] : memref<33x512xf32, #tpu.memory_space<vmem>>, vector<33x512xf32>
    %cst = arith.constant dense<0.000000e+00> : vector<8x512xf32>
    %2 = tpu.matmul %0, %1, %cst {dimension_numbers = #tpu.dot_dimension_numbers<[1], [0], [0], [1], [0, 0, 1, 1], [], []>} : vector<8x33xf32>, vector<33x512xf32>, vector<8x512xf32> -> vector<8x512xf32>
    %c0_3 = arith.constant 0 : index
    %c0_4 = arith.constant 0 : index
    %3 = vector.load %arg4[%c0_3, %c0_4] : memref<1x512xf32, #tpu.memory_space<vmem>>, vector<1x512xf32>
    %4 = vector.broadcast %3 : vector<1x512xf32> to vector<8x512xf32>
    %5 = arith.addf %2, %4 : vector<8x512xf32>
    %cst_5 = arith.constant 0.000000e+00 : f32
    %6 = vector.broadcast %cst_5 : f32 to vector<8x512xf32>
    %7 = arith.maximumf %5, %6 : vector<8x512xf32>
    %c0_6 = arith.constant 0 : index
    %c0_7 = arith.constant 0 : index
    %8 = vector.load %arg5[%c0_6, %c0_7] : memref<512x384xf32, #tpu.memory_space<vmem>>, vector<512x384xf32>
    %cst_8 = arith.constant dense<0.000000e+00> : vector<8x384xf32>
    %9 = tpu.matmul %7, %8, %cst_8 {dimension_numbers = #tpu.dot_dimension_numbers<[1], [0], [0], [1], [0, 0, 1, 1], [], []>} : vector<8x512xf32>, vector<512x384xf32>, vector<8x384xf32> -> vector<8x384xf32>
    %c0_9 = arith.constant 0 : index
    %c0_10 = arith.constant 0 : index
    %10 = vector.load %arg2[%c0_9, %c0_10] : memref<8x4xf32, #tpu.memory_space<vmem>>, vector<8x4xf32>
    %c0_11 = arith.constant 0 : index
    %c0_12 = arith.constant 0 : index
    %11 = vector.load %arg6[%c0_11, %c0_12] : memref<4x384xf32, #tpu.memory_space<vmem>>, vector<4x384xf32>
    %cst_13 = arith.constant dense<0.000000e+00> : vector<8x384xf32>
    %12 = tpu.matmul %10, %11, %cst_13 {dimension_numbers = #tpu.dot_dimension_numbers<[1], [0], [0], [1], [0, 0, 1, 1], [], []>} : vector<8x4xf32>, vector<4x384xf32>, vector<8x384xf32> -> vector<8x384xf32>
    %13 = arith.addf %9, %12 : vector<8x384xf32>
    %c0_14 = arith.constant 0 : index
    %c0_15 = arith.constant 0 : index
    %14 = vector.load %arg7[%c0_14, %c0_15] : memref<1x384xf32, #tpu.memory_space<vmem>>, vector<1x384xf32>
    %15 = vector.broadcast %14 : vector<1x384xf32> to vector<8x384xf32>
    %16 = arith.addf %13, %15 : vector<8x384xf32>
    %cst_16 = arith.constant 0.000000e+00 : f32
    %17 = vector.broadcast %cst_16 : f32 to vector<8x384xf32>
    %18 = arith.maximumf %16, %17 : vector<8x384xf32>
    %c0_17 = arith.constant 0 : index
    %c0_18 = arith.constant 0 : index
    %19 = vector.load %arg8[%c0_17, %c0_18] : memref<1x384xf32, #tpu.memory_space<vmem>>, vector<1x384xf32>
    %cst_19 = arith.constant dense<0.000000e+00> : vector<1x8xf32>
    %20 = tpu.matmul %19, %18, %cst_19 {dimension_numbers = #tpu.dot_dimension_numbers<[1], [1], [0], [0], [0, 0, 1, 0], [], []>} : vector<1x384xf32>, vector<8x384xf32>, vector<1x8xf32> -> vector<1x8xf32>
    %c0_20 = arith.constant 0 : index
    %c0_21 = arith.constant 0 : index
    %21 = vector.load %arg9[%c0_20, %c0_21] : memref<1x1xf32, #tpu.memory_space<vmem>>, vector<1x1xf32>
    %22 = vector.broadcast %21 : vector<1x1xf32> to vector<1x8xf32>
    %23 = arith.addf %20, %22 : vector<1x8xf32>
    %c0_22 = arith.constant 0 : index
    %c0_23 = arith.constant 0 : index
    %24 = vector.load %arg10[%c0_22, %c0_23] : memref<1x8xf32, #tpu.memory_space<vmem>>, vector<1x8xf32>
    tpu.vector_store %arg10[%c0_22, %c0_23], %23 {strides = array<i32>} : memref<1x8xf32, #tpu.memory_space<vmem>>, vector<1x8xf32>,
    return
  }
  func.func @transform_0(%arg0: i32) -> (i32, i32) {
    %c0_i32 = arith.constant 0 : i32
    %c0_i32_0 = arith.constant 0 : i32
    return %arg0, %c0_i32 : i32, i32
  }
  func.func @transform_1(%arg0: i32) -> (i32, i32) {
    %c0_i32 = arith.constant 0 : i32
    %c0_i32_0 = arith.constant 0 : i32
    return %arg0, %c0_i32 : i32, i32
  }
  func.func @transform_2(%arg0: i32) -> (i32, i32) {
    %c0_i32 = arith.constant 0 : i32
    %c0_i32_0 = arith.constant 0 : i32
    %c0_i32_1 = arith.constant 0 : i32
    return %c0_i32, %c0_i32_0 : i32, i32
  }
  func.func @transform_3(%arg0: i32) -> (i32, i32) {
    %c0_i32 = arith.constant 0 : i32
    %c0_i32_0 = arith.constant 0 : i32
    %c0_i32_1 = arith.constant 0 : i32
    return %c0_i32, %c0_i32_0 : i32, i32
  }
  func.func @transform_4(%arg0: i32) -> (i32, i32) {
    %c0_i32 = arith.constant 0 : i32
    %c0_i32_0 = arith.constant 0 : i32
    %c0_i32_1 = arith.constant 0 : i32
    return %c0_i32, %c0_i32_0 : i32, i32
  }
  func.func @transform_5(%arg0: i32) -> (i32, i32) {
    %c0_i32 = arith.constant 0 : i32
    %c0_i32_0 = arith.constant 0 : i32
    %c0_i32_1 = arith.constant 0 : i32
    return %c0_i32, %c0_i32_0 : i32, i32
  }
  func.func @transform_6(%arg0: i32) -> (i32, i32) {
    %c0_i32 = arith.constant 0 : i32
    %c0_i32_0 = arith.constant 0 : i32
    %c0_i32_1 = arith.constant 0 : i32
    return %c0_i32, %c0_i32_0 : i32, i32
  }
  func.func @transform_7(%arg0: i32) -> (i32, i32) {
    %c0_i32 = arith.constant 0 : i32
    %c0_i32_0 = arith.constant 0 : i32
    %c0_i32_1 = arith.constant 0 : i32
    return %c0_i32, %c0_i32_0 : i32, i32
  }
  func.func @transform_8(%arg0: i32) -> (i32, i32) {
    %c0_i32 = arith.constant 0 : i32
    %c0_i32_0 = arith.constant 0 : i32
    %c0_i32_1 = arith.constant 0 : i32
    return %c0_i32, %c0_i32_0 : i32, i32
  }
  func.func @transform_9(%arg0: i32) -> (i32, i32) {
    %c0_i32 = arith.constant 0 : i32
    %c0_i32_0 = arith.constant 0 : i32
    return %c0_i32, %arg0 : i32, i32
  }
}

</mosaic_0001>

<llo_original>
// kernel: tpu_custom_call.1
$region0: #{tpu_custom_call.1}
  #allocation0 [shape = 'u32[]', space=smem, size = 0x4, offset = 0x4, fixed_abs, tag = 'smem constant byte address 0x4 - core index']
  #allocation1 [shape = 'u32[144,128]{1,0:T(1,128)}', space=vmem, size = 0x12000, scoped, tag = 'internal scratch']
  #allocation2 [shape = 'f32[1,1]{1,0:T(1,128)S(1)}', space=vmem, size = 0x200, scoped, tag = 'scoped memory for tpu_custom_call.1']
  %s0 = inlined_call_operand.vmem [shape: f32[8,33], index: 0, kind: input, shape index: {}]
  %s1 = inlined_call_operand.vmem [shape: f32[8,4], index: 1, kind: input, shape index: {}]
  %s2 = inlined_call_operand.hbm [shape: f32[33,512], index: 2, kind: input, shape index: {}]
  %s3 = inlined_call_operand.vmem [shape: f32[1,512], index: 3, kind: input, shape index: {}]
  %s4 = inlined_call_operand.hbm [shape: f32[512,384], index: 4, kind: input, shape index: {}]
  %s5 = inlined_call_operand.vmem [shape: f32[4,384], index: 5, kind: input, shape index: {}]
  %s6 = inlined_call_operand.vmem [shape: f32[1,384], index: 6, kind: input, shape index: {}]
  %s7 = inlined_call_operand.vmem [shape: f32[1,384], index: 7, kind: input, shape index: {}]
  %s8 = inlined_call_operand.<no memory space> [shape: f32[1,1], index: 8, kind: input, shape index: {}]
  %s9 = inlined_call_operand.hbm [shape: f32[1,8], index: 9, kind: output, shape index: {}]
  %s10 = sld [smem:[#allocation0]]
  $region54: #{tpu_custom_call.1} parent=0
    _
  %s12 = ssub.s32 1, %s10
  %s13 = scalar_select 0, %s12, %s10
  %v14 = vstv %s8
  %15 = vst [vmem:[#allocation2] sm:$0x1] %v14
  $region1: #{tpu_custom_call.1} parent=0
    #allocation3 [shape = 'u8[81920]{0}', space=vmem, size = 0x14000, scoped, tag = 'input window, operand 2, single buffered']
    #allocation4 [shape = 's32[1]{0}', space=sflag, size = 0x4, scoped, tag = 'scoped memory for tpu_custom_call.1']
    #allocation5 [shape = 's32[1]{0}', space=sflag, size = 0x4, scoped, tag = 'scoped memory for tpu_custom_call.1']
    #allocation6 [shape = 'u8[786432]{0}', space=vmem, size = 0xc0000, scoped, tag = 'input window, operand 4, single buffered']
    #allocation7 [shape = 's32[1]{0}', space=sflag, size = 0x4, scoped, tag = 'scoped memory for tpu_custom_call.1']
    #allocation8 [shape = 'u8[512]{0}', space=vmem, size = 0x400, scoped, tag = 'output window, operand 0, single buffered']
    %16 = vsyncpa [#allocation4], 0
    %17 = vsyncpa [#allocation7], 0
    %18 = vsyncpa [#allocation5], 0
    // Predicated region
    $region2: #{tpu_custom_call.1} parent=1 // pred_check
      _
    $region3: #{tpu_custom_call.1} parent=1 // pred_check_branch
      %20 = sbr.rel (0) target = $region5
    $region4: #{tpu_custom_call.1} parent=1 // pred_region
      _
    $region5: #{tpu_custom_call.1} parent=1 // pred_fallthru
      _
    // Predicated region
    $region6: #{tpu_custom_call.1} parent=1 // pred_check
      _
    $region7: #{tpu_custom_call.1} parent=1 // pred_check_branch
      %22 = sbr.rel (0) target = $region9
    $region8: #{tpu_custom_call.1} parent=1 // pred_region
      _
    $region9: #{tpu_custom_call.1} parent=1 // pred_fallthru
      _
    // Predicated region
    $region10: #{tpu_custom_call.1} parent=1 // pred_check
      _
    $region11: #{tpu_custom_call.1} parent=1 // pred_check_branch
      %24 = sbr.rel (0) target = $region13
    $region12: #{tpu_custom_call.1} parent=1 // pred_region
      %s26 = ssub.s32 2560, 2560
      %27 = vsyncadd [#allocation4], %s26
      %s28 = sshll.u32 [#allocation3], 4
      %s29 = int_to_ptr.vmem [resolvable:$true] %s28
      %34 = dma.hbm_to_vmem [thread:$0]  %s2, 2560, %s29, [#allocation4], 512, 512, 32
    $region13: #{tpu_custom_call.1} parent=1 // pred_fallthru
      _
    // Predicated region
    $region14: #{tpu_custom_call.1} parent=1 // pred_check
      _
    $region15: #{tpu_custom_call.1} parent=1 // pred_check_branch
      %36 = sbr.rel (0) target = $region17
    $region16: #{tpu_custom_call.1} parent=1 // pred_region
      _
    $region17: #{tpu_custom_call.1} parent=1 // pred_fallthru
      _
    // Predicated region
    $region18: #{tpu_custom_call.1} parent=1 // pred_check
      _
    $region19: #{tpu_custom_call.1} parent=1 // pred_check_branch
      %38 = sbr.rel (0) target = $region21
    $region20: #{tpu_custom_call.1} parent=1 // pred_region
      %s40 = ssub.s32 24576, 24576
      %41 = vsyncadd [#allocation7], %s40
      %s42 = sshll.u32 [#allocation6], 4
      %s43 = int_to_ptr.vmem [resolvable:$true] %s42
      %48 = dma.hbm_to_vmem [thread:$0]  %s4, 24576, %s43, [#allocation7], 384, 384, 24
    $region21: #{tpu_custom_call.1} parent=1 // pred_fallthru
      _
    // Predicated region
    $region22: #{tpu_custom_call.1} parent=1 // pred_check
      _
    $region23: #{tpu_custom_call.1} parent=1 // pred_check_branch
      %50 = sbr.rel (0) target = $region25
    $region24: #{tpu_custom_call.1} parent=1 // pred_region
      _
    $region25: #{tpu_custom_call.1} parent=1 // pred_fallthru
      _
    // Predicated region
    $region26: #{tpu_custom_call.1} parent=1 // pred_check
      _
    $region27: #{tpu_custom_call.1} parent=1 // pred_check_branch
      %52 = sbr.rel (0) target = $region29
    $region28: #{tpu_custom_call.1} parent=1 // pred_region
      _
    $region29: #{tpu_custom_call.1} parent=1 // pred_fallthru
      _
    // Predicated region
    $region30: #{tpu_custom_call.1} parent=1 // pred_check
      _
    $region31: #{tpu_custom_call.1} parent=1 // pred_check_branch
      %54 = sbr.rel (0) target = $region33
    $region32: #{tpu_custom_call.1} parent=1 // pred_region
      _
    $region33: #{tpu_custom_call.1} parent=1 // pred_fallthru
      _
    // Predicated region
    $region34: #{tpu_custom_call.1} parent=1 // pred_check
      _
    $region35: #{tpu_custom_call.1} parent=1 // pred_check_branch
      %56 = sbr.rel (0) target = $region37
    $region36: #{tpu_custom_call.1} parent=1 // pred_region
      _
    $region37: #{tpu_custom_call.1} parent=1 // pred_fallthru
      _
    // Predicated region
    $region38: #{tpu_custom_call.1} parent=1 // pred_check
      _
    $region39: #{tpu_custom_call.1} parent=1 // pred_check_branch
      %58 = sbr.rel (0) target = $region41
    $region40: #{tpu_custom_call.1} parent=1 // pred_region
      %59 = dma.done [#allocation4], 2560
    $region41: #{tpu_custom_call.1} parent=1 // pred_fallthru
      _
    // Predicated region
    $region42: #{tpu_custom_call.1} parent=1 // pred_check
      _
    $region43: #{tpu_custom_call.1} parent=1 // pred_check_branch
      %61 = sbr.rel (0) target = $region45
    $region44: #{tpu_custom_call.1} parent=1 // pred_region
      %62 = dma.done [#allocation7], 24576
    $region45: #{tpu_custom_call.1} parent=1 // pred_fallthru
      _
    %v63 = vld [vmem:[%s0] sm:$0xff]
    %v64 = vld [vmem:[#allocation3] sm:$0xff]
    %v65 = vld [vmem:[#allocation3 + $0x8] sm:$0xff]
    %v66 = vld [vmem:[#allocation3 + $0x10] sm:$0xff]
    %v67 = vld [vmem:[#allocation3 + $0x18] sm:$0xff]
    %v68 = vld [vmem:[#allocation3 + $0x20] sm:$0xff]
    %v69 = vld [vmem:[#allocation3 + $0x28] sm:$0xff]
    %v70 = vld [vmem:[#allocation3 + $0x30] sm:$0xff]
    %v71 = vld [vmem:[#allocation3 + $0x38] sm:$0xff]
    %v72 = vld [vmem:[#allocation3 + $0x40] sm:$0xff]
    %v73 = vld [vmem:[#allocation3 + $0x48] sm:$0xff]
    %v74 = vld [vmem:[#allocation3 + $0x50] sm:$0xff]
    %v75 = vld [vmem:[#allocation3 + $0x58] sm:$0xff]
    %v76 = vld [vmem:[#allocation3 + $0x60] sm:$0xff]
    %v77 = vld [vmem:[#allocation3 + $0x68] sm:$0xff]
    %v78 = vld [vmem:[#allocation3 + $0x70] sm:$0xff]
    %v79 = vld [vmem:[#allocation3 + $0x78] sm:$0xff]
    %v80 = vld [vmem:[#allocation3 + $0x80] sm:$0x1]
    %v81 = vld [vmem:[#allocation3 + $0x88] sm:$0x1]
    %v82 = vld [vmem:[#allocation3 + $0x90] sm:$0x1]
    %v83 = vld [vmem:[#allocation3 + $0x98] sm:$0x1]
    %v84 = vld [vmem:[%s3] sm:$0xf]
    %v86 = vlaneseq
    %v87 = vshrl.u32 %v86, 7
    %v88 = vsub.s32 0, %v87
    %v89 = vrot.slane %v84, %v88
    %v90 = vlaneseq
    %v91 = vshrl.u32 %v90, 7
    %v92 = vsub.s32 1, %v91
    %v93 = vrot.slane %v84, %v92
    %v94 = vlaneseq
    %v95 = vshrl.u32 %v94, 7
    %v96 = vsub.s32 2, %v95
    %v97 = vrot.slane %v84, %v96
    %v98 = vlaneseq
    %v99 = vshrl.u32 %v98, 7
    %v100 = vsub.s32 3, %v99
    %v101 = vrot.slane %v84, %v100
    %vm106 = vcmask 269312
    %v108 = vsel %vm106, %v63, 0
    %vm110 = vcmask 1040384
    %v112 = vsel %vm110, %v80, 0
    %v115 = vsel %vm110, %v81, 0
    %v118 = vsel %vm110, %v82, 0
    %v121 = vsel %vm110, %v83, 0
    %123 = vmatprep.subr.mxu0 %v65
    %124 = vmatpush1.msra.mxu0 %v64
    %125 = vmatprep.subr.mxu0 %v69
    %126 = vmatpush1.msra.mxu0 %v68
    %127 = vmatprep.subr.mxu0 %v73
    %128 = vmatpush1.msra.mxu0 %v72
    %129 = vmatprep.subr.mxu0 %v77
    %130 = vmatpush1.msra.mxu0 %v76
    %131 = vmatprep.subr.mxu0 %v115
    %132 = vmatpush1.msra.mxu0 %v112
    %133 = vmatprep.subr.mxu0 0.0
    %134 = vmatpush1.msra.mxu0 0.0
    %135 = vmatprep.subr.mxu0 0.0
    %136 = vmatpush1.msra.mxu0 0.0
    %137 = vmatprep.subr.mxu0 0.0
    %138 = vmatpush1.msra.mxu0 0.0
    %139 = vmatprep.subr.mxu0 0.0
    %140 = vmatpush1.msra.mxu0 0.0
    %141 = vmatprep.subr.mxu0 0.0
    %142 = vmatpush1.msra.mxu0 0.0
    %143 = vmatprep.subr.mxu0 0.0
    %144 = vmatpush1.msra.mxu0 0.0
    %145 = vmatprep.subr.mxu0 0.0
    %146 = vmatpush1.msra.mxu0 0.0
    %147 = vmatprep.subr.mxu0 0.0
    %148 = vmatpush1.msra.mxu0 0.0
    %149 = vmatprep.subr.mxu0 0.0
    %150 = vmatpush1.msra.mxu0 0.0
    %151 = vmatprep.subr.mxu0 0.0
    %152 = vmatpush1.msra.mxu0 0.0
    %153 = vmatprep.subr.mxu0 0.0
    %154 = vmatpush1.msra.mxu0 0.0
    %155 = vmatprep.subr.mxu0 0.0
    %156 = vmatpush1.msra.mxu0 0.0
    %157 = vmatprep.subr.mxu0 0.0
    %158 = vmatpush1.msra.mxu0 0.0
    %159 = vmatprep.subr.mxu0 0.0
    %160 = vmatpush1.msra.mxu0 0.0
    %161 = vmatprep.subr.mxu0 0.0
    %162 = vmatpush1.msra.mxu0 0.0
    %163 = vmatprep.subr.mxu0 0.0
    %164 = vmatpush1.msra.mxu0 0.0
    %165 = vmatprep.subr.mxu0 0.0
    %166 = vmatpush1.msra.mxu0 0.0
    %167 = vmatprep.subr.mxu0 0.0
    %168 = vmatpush1.msra.mxu0 0.0
    %169 = vmatprep.subr.mxu0 0.0
    %170 = vmatpush1.msra.mxu0 0.0
    %171 = vmatprep.subr.mxu0 0.0
    %172 = vmatpush1.msra.mxu0 0.0
    %173 = vmatprep.subr.mxu0 0.0
    %174 = vmatpush1.msra.mxu0 0.0
    %175 = vmatprep.subr.mxu0 0.0
    %176 = vmatpush1.msra.mxu0 0.0
    %177 = vmatprep.subr.mxu0 0.0
    %178 = vmatpush1.msra.mxu0 0.0
    %179 = vmatprep.subr.mxu0 0.0
    %180 = vmatpush1.msra.mxu0 0.0
    %181 = vmatprep.subr.mxu0 0.0
    %182 = vmatpush1.msra.mxu0 0.0
    %183 = vmatprep.subr.mxu0 0.0
    %184 = vmatpush1.msra.mxu0 0.0
    %185 = vmatprep.subr.mxu0 0.0
    %186 = vmatpush1.msra.mxu0 0.0
    %187 = vmatprep.mubr.f32.mxu0 0.0
    %188 = vmatmul.mubr.f32.gmra.mrb[0].mxu0 %v108
    %v189 = vpop.f32.mrb[0].mxu0
    %v190 = vadd.f32 %v89, %v189
    %v191 = vpop.f32.mrb[0].mxu0
    %v192 = vadd.f32 %v93, %v191
    %193 = vdwg.mxu0
    %194 = vmatprep.subr.mxu0 %v67
    %195 = vmatpush1.msra.mxu0 %v66
    %196 = vmatprep.subr.mxu0 %v71
    %197 = vmatpush1.msra.mxu0 %v70
    %198 = vmatprep.subr.mxu0 %v75
    %199 = vmatpush1.msra.mxu0 %v74
    %200 = vmatprep.subr.mxu0 %v79
    %201 = vmatpush1.msra.mxu0 %v78
    %202 = vmatprep.subr.mxu0 %v121
    %203 = vmatpush1.msra.mxu0 %v118
    %204 = vmatprep.subr.mxu0 0.0
    %205 = vmatpush1.msra.mxu0 0.0
    %206 = vmatprep.subr.mxu0 0.0
    %207 = vmatpush1.msra.mxu0 0.0
    %208 = vmatprep.subr.mxu0 0.0
    %209 = vmatpush1.msra.mxu0 0.0
    %210 = vmatprep.subr.mxu0 0.0
    %211 = vmatpush1.msra.mxu0 0.0
    %212 = vmatprep.subr.mxu0 0.0
    %213 = vmatpush1.msra.mxu0 0.0
    %214 = vmatprep.subr.mxu0 0.0
    %215 = vmatpush1.msra.mxu0 0.0
    %216 = vmatprep.subr.mxu0 0.0
    %217 = vmatpush1.msra.mxu0 0.0
    %218 = vmatprep.subr.mxu0 0.0
    %219 = vmatpush1.msra.mxu0 0.0
    %220 = vmatprep.subr.mxu0 0.0
    %221 = vmatpush1.msra.mxu0 0.0
    %222 = vmatprep.subr.mxu0 0.0
    %223 = vmatpush1.msra.mxu0 0.0
    %224 = vmatprep.subr.mxu0 0.0
    %225 = vmatpush1.msra.mxu0 0.0
    %226 = vmatprep.subr.mxu0 0.0
    %227 = vmatpush1.msra.mxu0 0.0
    %228 = vmatprep.subr.mxu0 0.0
    %229 = vmatpush1.msra.mxu0 0.0
    %230 = vmatprep.subr.mxu0 0.0
    %231 = vmatpush1.msra.mxu0 0.0
    %232 = vmatprep.subr.mxu0 0.0
    %233 = vmatpush1.msra.mxu0 0.0
    %234 = vmatprep.subr.mxu0 0.0
    %235 = vmatpush1.msra.mxu0 0.0
    %236 = vmatprep.subr.mxu0 0.0
    %237 = vmatpush1.msra.mxu0 0.0
    %238 = vmatprep.subr.mxu0 0.0
    %239 = vmatpush1.msra.mxu0 0.0
    %240 = vmatprep.subr.mxu0 0.0
    %241 = vmatpush1.msra.mxu0 0.0
    %242 = vmatprep.subr.mxu0 0.0
    %243 = vmatpush1.msra.mxu0 0.0
    %244 = vmatprep.subr.mxu0 0.0
    %245 = vmatpush1.msra.mxu0 0.0
    %246 = vmatprep.subr.mxu0 0.0
    %247 = vmatpush1.msra.mxu0 0.0
    %248 = vmatprep.subr.mxu0 0.0
    %249 = vmatpush1.msra.mxu0 0.0
    %250 = vmatprep.subr.mxu0 0.0
    %251 = vmatpush1.msra.mxu0 0.0
    %252 = vmatprep.subr.mxu0 0.0
    %253 = vmatpush1.msra.mxu0 0.0
    %254 = vmatprep.subr.mxu0 0.0
    %255 = vmatpush1.msra.mxu0 0.0
    %256 = vmatprep.subr.mxu0 0.0
    %257 = vmatpush1.msra.mxu0 0.0
    %258 = vmatprep.mubr.f32.mxu0 0.0
    %259 = vmatmul.mubr.f32.gmra.mrb[0].mxu0 %v108
    %v260 = vpop.f32.mrb[0].mxu0
    %v261 = vadd.f32 %v97, %v260
    %v262 = vpop.f32.mrb[0].mxu0
    %v263 = vadd.f32 %v101, %v262
    %264 = vdwg.mxu0
    %v265 = vmax.f32 %v190, 0.0
    %v266 = vmax.f32 %v192, 0.0
    %v267 = vmax.f32 %v261, 0.0
    %v268 = vmax.f32 %v263, 0.0
    %v269 = vld [vmem:[#allocation6] sm:$0xff]
    %v270 = vld [vmem:[#allocation6 + $0x8] sm:$0xff]
    %v271 = vld [vmem:[#allocation6 + $0x10] sm:$0xff]
    %v272 = vld [vmem:[#allocation6 + $0x18] sm:$0xff]
    %v273 = vld [vmem:[#allocation6 + $0x20] sm:$0xff]
    %v274 = vld [vmem:[#allocation6 + $0x28] sm:$0xff]
    %v275 = vld [vmem:[#allocation6 + $0x30] sm:$0xff]
    %v276 = vld [vmem:[#allocation6 + $0x38] sm:$0xff]
    %v277 = vld [vmem:[#allocation6 + $0x40] sm:$0xff]
    %v278 = vld [vmem:[#allocation6 + $0x48] sm:$0xff]
    %v279 = vld [vmem:[#allocation6 + $0x50] sm:$0xff]
    %v280 = vld [vmem:[#allocation6 + $0x58] sm:$0xff]
    %v281 = vld [vmem:[#allocation6 + $0x60] sm:$0xff]
    %v282 = vld [vmem:[#allocation6 + $0x68] sm:$0xff]
    %v283 = vld [vmem:[#allocation6 + $0x70] sm:$0xff]
    %v284 = vld [vmem:[#allocation6 + $0x78] sm:$0xff]
    %v285 = vld [vmem:[#allocation6 + $0x80] sm:$0xff]
    %v286 = vld [vmem:[#allocation6 + $0x88] sm:$0xff]
    %v287 = vld [vmem:[#allocation6 + $0x90] sm:$0xff]
    %v288 = vld [vmem:[#allocation6 + $0x98] sm:$0xff]
    %v289 = vld [vmem:[#allocation6 + $0xa0] sm:$0xff]
    %v290 = vld [vmem:[#allocation6 + $0xa8] sm:$0xff]
    %v291 = vld [vmem:[#allocation6 + $0xb0] sm:$0xff]
    %v292 = vld [vmem:[#allocation6 + $0xb8] sm:$0xff]
    %v293 = vld [vmem:[#allocation6 + $0xc0] sm:$0xff]
    %v294 = vld [vmem:[#allocation6 + $0xc8] sm:$0xff]
    %v295 = vld [vmem:[#allocation6 + $0xd0] sm:$0xff]
    %v296 = vld [vmem:[#allocation6 + $0xd8] sm:$0xff]
    %v297 = vld [vmem:[#allocation6 + $0xe0] sm:$0xff]
    %v298 = vld [vmem:[#allocation6 + $0xe8] sm:$0xff]
    %v299 = vld [vmem:[#allocation6 + $0xf0] sm:$0xff]
    %v300 = vld [vmem:[#allocation6 + $0xf8] sm:$0xff]
    %v301 = vld [vmem:[#allocation6 + $0x100] sm:$0xff]
    %v302 = vld [vmem:[#allocation6 + $0x108] sm:$0xff]
    %v303 = vld [vmem:[#allocation6 + $0x110] sm:$0xff]
    %v304 = vld [vmem:[#allocation6 + $0x118] sm:$0xff]
    %v305 = vld [vmem:[#allocation6 + $0x120] sm:$0xff]
    %v306 = vld [vmem:[#allocation6 + $0x128] sm:$0xff]
    %v307 = vld [vmem:[#allocation6 + $0x130] sm:$0xff]
    %v308 = vld [vmem:[#allocation6 + $0x138] sm:$0xff]
    %v309 = vld [vmem:[#allocation6 + $0x140] sm:$0xff]
    %v310 = vld [vmem:[#allocation6 + $0x148] sm:$0xff]
    %v311 = vld [vmem:[#allocation6 + $0x150] sm:$0xff]
    %v312 = vld [vmem:[#allocation6 + $0x158] sm:$0xff]
    %v313 = vld [vmem:[#allocation6 + $0x160] sm:$0xff]
    %v314 = vld [vmem:[#allocation6 + $0x168] sm:$0xff]
    %v315 = vld [vmem:[#allocation6 + $0x170] sm:$0xff]
    %v316 = vld [vmem:[#allocation6 + $0x178] sm:$0xff]
    %v317 = vld [vmem:[#allocation6 + $0x180] sm:$0xff]
    %v318 = vld [vmem:[#allocation6 + $0x188] sm:$0xff]
    %v319 = vld [vmem:[#allocation6 + $0x190] sm:$0xff]
    %v320 = vld [vmem:[#allocation6 + $0x198] sm:$0xff]
    %v321 = vld [vmem:[#allocation6 + $0x1a0] sm:$0xff]
    %v322 = vld [vmem:[#allocation6 + $0x1a8] sm:$0xff]
    %v323 = vld [vmem:[#allocation6 + $0x1b0] sm:$0xff]
    %v324 = vld [vmem:[#allocation6 + $0x1b8] sm:$0xff]
    %v325 = vld [vmem:[#allocation6 + $0x1c0] sm:$0xff]
    %v326 = vld [vmem:[#allocation6 + $0x1c8] sm:$0xff]
    %v327 = vld [vmem:[#allocation6 + $0x1d0] sm:$0xff]
    %v328 = vld [vmem:[#allocation6 + $0x1d8] sm:$0xff]
    %v329 = vld [vmem:[#allocation6 + $0x1e0] sm:$0xff]
    %v330 = vld [vmem:[#allocation6 + $0x1e8] sm:$0xff]
    %v331 = vld [vmem:[#allocation6 + $0x1f0] sm:$0xff]
    %v332 = vld [vmem:[#allocation6 + $0x1f8] sm:$0xff]
    %v333 = vld [vmem:[#allocation6 + $0x200] sm:$0xff]
    %v334 = vld [vmem:[#allocation6 + $0x208] sm:$0xff]
    %v335 = vld [vmem:[#allocation6 + $0x210] sm:$0xff]
    %v336 = vld [vmem:[#allocation6 + $0x218] sm:$0xff]
    %v337 = vld [vmem:[#allocation6 + $0x220] sm:$0xff]
    %v338 = vld [vmem:[#allocation6 + $0x228] sm:$0xff]
    %v339 = vld [vmem:[#allocation6 + $0x230] sm:$0xff]
    %v340 = vld [vmem:[#allocation6 + $0x238] sm:$0xff]
    %v341 = vld [vmem:[#allocation6 + $0x240] sm:$0xff]
    %v342 = vld [vmem:[#allocation6 + $0x248] sm:$0xff]
    %v343 = vld [vmem:[#allocation6 + $0x250] sm:$0xff]
    %v344 = vld [vmem:[#allocation6 + $0x258] sm:$0xff]
    %v345 = vld [vmem:[#allocation6 + $0x260] sm:$0xff]
    %v346 = vld [vmem:[#allocation6 + $0x268] sm:$0xff]
    %v347 = vld [vmem:[#allocation6 + $0x270] sm:$0xff]
    %v348 = vld [vmem:[#allocation6 + $0x278] sm:$0xff]
    %v349 = vld [vmem:[#allocation6 + $0x280] sm:$0xff]
    %v350 = vld [vmem:[#allocation6 + $0x288] sm:$0xff]
    %v351 = vld [vmem:[#allocation6 + $0x290] sm:$0xff]
    %v352 = vld [vmem:[#allocation6 + $0x298] sm:$0xff]
    %v353 = vld [vmem:[#allocation6 + $0x2a0] sm:$0xff]
    %v354 = vld [vmem:[#allocation6 + $0x2a8] sm:$0xff]
    %v355 = vld [vmem:[#allocation6 + $0x2b0] sm:$0xff]
    %v356 = vld [vmem:[#allocation6 + $0x2b8] sm:$0xff]
    %v357 = vld [vmem:[#allocation6 + $0x2c0] sm:$0xff]
    %v358 = vld [vmem:[#allocation6 + $0x2c8] sm:$0xff]
    %v359 = vld [vmem:[#allocation6 + $0x2d0] sm:$0xff]
    %v360 = vld [vmem:[#allocation6 + $0x2d8] sm:$0xff]
    %v361 = vld [vmem:[#allocation6 + $0x2e0] sm:$0xff]
    %v362 = vld [vmem:[#allocation6 + $0x2e8] sm:$0xff]
    %v363 = vld [vmem:[#allocation6 + $0x2f0] sm:$0xff]
    %v364 = vld [vmem:[#allocation6 + $0x2f8] sm:$0xff]
    %v365 = vld [vmem:[#allocation6 + $0x300] sm:$0xff]
    %v366 = vld [vmem:[#allocation6 + $0x308] sm:$0xff]
    %v367 = vld [vmem:[#allocation6 + $0x310] sm:$0xff]
    %v368 = vld [vmem:[#allocation6 + $0x318] sm:$0xff]
    %v369 = vld [vmem:[#allocation6 + $0x320] sm:$0xff]
    %v370 = vld [vmem:[#allocation6 + $0x328] sm:$0xff]
    %v371 = vld [vmem:[#allocation6 + $0x330] sm:$0xff]
    %v372 = vld [vmem:[#allocation6 + $0x338] sm:$0xff]
    %v373 = vld [vmem:[#allocation6 + $0x340] sm:$0xff]
    %v374 = vld [vmem:[#allocation6 + $0x348] sm:$0xff]
    %v375 = vld [vmem:[#allocation6 + $0x350] sm:$0xff]
    %v376 = vld [vmem:[#allocation6 + $0x358] sm:$0xff]
    %v377 = vld [vmem:[#allocation6 + $0x360] sm:$0xff]
    %v378 = vld [vmem:[#allocation6 + $0x368] sm:$0xff]
    %v379 = vld [vmem:[#allocation6 + $0x370] sm:$0xff]
    %v380 = vld [vmem:[#allocation6 + $0x378] sm:$0xff]
    %v381 = vld [vmem:[#allocation6 + $0x380] sm:$0xff]
    %v382 = vld [vmem:[#allocation6 + $0x388] sm:$0xff]
    %v383 = vld [vmem:[#allocation6 + $0x390] sm:$0xff]
    %v384 = vld [vmem:[#allocation6 + $0x398] sm:$0xff]
    %v385 = vld [vmem:[#allocation6 + $0x3a0] sm:$0xff]
    %v386 = vld [vmem:[#allocation6 + $0x3a8] sm:$0xff]
    %v387 = vld [vmem:[#allocation6 + $0x3b0] sm:$0xff]
    %v388 = vld [vmem:[#allocation6 + $0x3b8] sm:$0xff]
    %v389 = vld [vmem:[#allocation6 + $0x3c0] sm:$0xff]
    %v390 = vld [vmem:[#allocation6 + $0x3c8] sm:$0xff]
    %v391 = vld [vmem:[#allocation6 + $0x3d0] sm:$0xff]
    %v392 = vld [vmem:[#allocation6 + $0x3d8] sm:$0xff]
    %v393 = vld [vmem:[#allocation6 + $0x3e0] sm:$0xff]
    %v394 = vld [vmem:[#allocation6 + $0x3e8] sm:$0xff]
    %v395 = vld [vmem:[#allocation6 + $0x3f0] sm:$0xff]
    %v396 = vld [vmem:[#allocation6 + $0x3f8] sm:$0xff]
    %v397 = vld [vmem:[#allocation6 + $0x400] sm:$0xff]
    %v398 = vld [vmem:[#allocation6 + $0x408] sm:$0xff]
    %v399 = vld [vmem:[#allocation6 + $0x410] sm:$0xff]
    %v400 = vld [vmem:[#allocation6 + $0x418] sm:$0xff]
    %v401 = vld [vmem:[#allocation6 + $0x420] sm:$0xff]
    %v402 = vld [vmem:[#allocation6 + $0x428] sm:$0xff]
    %v403 = vld [vmem:[#allocation6 + $0x430] sm:$0xff]
    %v404 = vld [vmem:[#allocation6 + $0x438] sm:$0xff]
    %v405 = vld [vmem:[#allocation6 + $0x440] sm:$0xff]
    %v406 = vld [vmem:[#allocation6 + $0x448] sm:$0xff]
    %v407 = vld [vmem:[#allocation6 + $0x450] sm:$0xff]
    %v408 = vld [vmem:[#allocation6 + $0x458] sm:$0xff]
    %v409 = vld [vmem:[#allocation6 + $0x460] sm:$0xff]
    %v410 = vld [vmem:[#allocation6 + $0x468] sm:$0xff]
    %v411 = vld [vmem:[#allocation6 + $0x470] sm:$0xff]
    %v412 = vld [vmem:[#allocation6 + $0x478] sm:$0xff]
    %v413 = vld [vmem:[#allocation6 + $0x480] sm:$0xff]
    %v414 = vld [vmem:[#allocation6 + $0x488] sm:$0xff]
    %v415 = vld [vmem:[#allocation6 + $0x490] sm:$0xff]
    %v416 = vld [vmem:[#allocation6 + $0x498] sm:$0xff]
    %v417 = vld [vmem:[#allocation6 + $0x4a0] sm:$0xff]
    %v418 = vld [vmem:[#allocation6 + $0x4a8] sm:$0xff]
    %v419 = vld [vmem:[#allocation6 + $0x4b0] sm:$0xff]
    %v420 = vld [vmem:[#allocation6 + $0x4b8] sm:$0xff]
    %v421 = vld [vmem:[#allocation6 + $0x4c0] sm:$0xff]
    %v422 = vld [vmem:[#allocation6 + $0x4c8] sm:$0xff]
    %v423 = vld [vmem:[#allocation6 + $0x4d0] sm:$0xff]
    %v424 = vld [vmem:[#allocation6 + $0x4d8] sm:$0xff]
    %v425 = vld [vmem:[#allocation6 + $0x4e0] sm:$0xff]
    %v426 = vld [vmem:[#allocation6 + $0x4e8] sm:$0xff]
    %v427 = vld [vmem:[#allocation6 + $0x4f0] sm:$0xff]
    %v428 = vld [vmem:[#allocation6 + $0x4f8] sm:$0xff]
    %v429 = vld [vmem:[#allocation6 + $0x500] sm:$0xff]
    %v430 = vld [vmem:[#allocation6 + $0x508] sm:$0xff]
    %v431 = vld [vmem:[#allocation6 + $0x510] sm:$0xff]
    %v432 = vld [vmem:[#allocation6 + $0x518] sm:$0xff]
    %v433 = vld [vmem:[#allocation6 + $0x520] sm:$0xff]
    %v434 = vld [vmem:[#allocation6 + $0x528] sm:$0xff]
    %v435 = vld [vmem:[#allocation6 + $0x530] sm:$0xff]
    %v436 = vld [vmem:[#allocation6 + $0x538] sm:$0xff]
    %v437 = vld [vmem:[#allocation6 + $0x540] sm:$0xff]
    %v438 = vld [vmem:[#allocation6 + $0x548] sm:$0xff]
    %v439 = vld [vmem:[#allocation6 + $0x550] sm:$0xff]
    %v440 = vld [vmem:[#allocation6 + $0x558] sm:$0xff]
    %v441 = vld [vmem:[#allocation6 + $0x560] sm:$0xff]
    %v442 = vld [vmem:[#allocation6 + $0x568] sm:$0xff]
    %v443 = vld [vmem:[#allocation6 + $0x570] sm:$0xff]
    %v444 = vld [vmem:[#allocation6 + $0x578] sm:$0xff]
    %v445 = vld [vmem:[#allocation6 + $0x580] sm:$0xff]
    %v446 = vld [vmem:[#allocation6 + $0x588] sm:$0xff]
    %v447 = vld [vmem:[#allocation6 + $0x590] sm:$0xff]
    %v448 = vld [vmem:[#allocation6 + $0x598] sm:$0xff]
    %v449 = vld [vmem:[#allocation6 + $0x5a0] sm:$0xff]
    %v450 = vld [vmem:[#allocation6 + $0x5a8] sm:$0xff]
    %v451 = vld [vmem:[#allocation6 + $0x5b0] sm:$0xff]
    %v452 = vld [vmem:[#allocation6 + $0x5b8] sm:$0xff]
    %v453 = vld [vmem:[#allocation6 + $0x5c0] sm:$0xff]
    %v454 = vld [vmem:[#allocation6 + $0x5c8] sm:$0xff]
    %v455 = vld [vmem:[#allocation6 + $0x5d0] sm:$0xff]
    %v456 = vld [vmem:[#allocation6 + $0x5d8] sm:$0xff]
    %v457 = vld [vmem:[#allocation6 + $0x5e0] sm:$0xff]
    %v458 = vld [vmem:[#allocation6 + $0x5e8] sm:$0xff]
    %v459 = vld [vmem:[#allocation6 + $0x5f0] sm:$0xff]
    %v460 = vld [vmem:[#allocation6 + $0x5f8] sm:$0xff]
    %v461 = vld [vmem:[%s1] sm:$0xff]
    %v462 = vld [vmem:[%s5] sm:$0xff]
    %v463 = vld [vmem:[%s5 + $0x8] sm:$0xf]
    %v466 = vcombine.high %v462, %v462
    %vm467 = vcmask 31744
    %v469 = vsel %vm467, %v461, 0
    %vm471 = vcmask 1043456
    %v472 = vsel %vm471, %v462, 0
    %v474 = vsel %vm471, %v466, 0
    %v476 = vsel %vm471, %v463, 0
    %478 = vmatprep.subr.mxu0 %v474
    %479 = vmatpush1.msra.mxu0 %v472
    %480 = vmatprep.subr.mxu0 0.0
    %481 = vmatpush1.msra.mxu0 0.0
    %482 = vmatprep.subr.mxu0 0.0
    %483 = vmatpush1.msra.mxu0 0.0
    %484 = vmatprep.subr.mxu0 0.0
    %485 = vmatpush1.msra.mxu0 0.0
    %486 = vmatprep.subr.mxu0 0.0
    %487 = vmatpush1.msra.mxu0 0.0
    %488 = vmatprep.subr.mxu0 0.0
    %489 = vmatpush1.msra.mxu0 0.0
    %490 = vmatprep.subr.mxu0 0.0
    %491 = vmatpush1.msra.mxu0 0.0
    %492 = vmatprep.subr.mxu0 0.0
    %493 = vmatpush1.msra.mxu0 0.0
    %494 = vmatprep.subr.mxu0 0.0
    %495 = vmatpush1.msra.mxu0 0.0
    %496 = vmatprep.subr.mxu0 0.0
    %497 = vmatpush1.msra.mxu0 0.0
    %498 = vmatprep.subr.mxu0 0.0
    %499 = vmatpush1.msra.mxu0 0.0
    %500 = vmatprep.subr.mxu0 0.0
    %501 = vmatpush1.msra.mxu0 0.0
    %502 = vmatprep.subr.mxu0 0.0
    %503 = vmatpush1.msra.mxu0 0.0
    %504 = vmatprep.subr.mxu0 0.0
    %505 = vmatpush1.msra.mxu0 0.0
    %506 = vmatprep.subr.mxu0 0.0
    %507 = vmatpush1.msra.mxu0 0.0
    %508 = vmatprep.subr.mxu0 0.0
    %509 = vmatpush1.msra.mxu0 0.0
    %510 = vmatprep.subr.mxu0 0.0
    %511 = vmatpush1.msra.mxu0 0.0
    %512 = vmatprep.subr.mxu0 0.0
    %513 = vmatpush1.msra.mxu0 0.0
    %514 = vmatprep.subr.mxu0 0.0
    %515 = vmatpush1.msra.mxu0 0.0
    %516 = vmatprep.subr.mxu0 0.0
    %517 = vmatpush1.msra.mxu0 0.0
    %518 = vmatprep.subr.mxu0 0.0
    %519 = vmatpush1.msra.mxu0 0.0
    %520 = vmatprep.subr.mxu0 0.0
    %521 = vmatpush1.msra.mxu0 0.0
    %522 = vmatprep.subr.mxu0 0.0
    %523 = vmatpush1.msra.mxu0 0.0
    %524 = vmatprep.subr.mxu0 0.0
    %525 = vmatpush1.msra.mxu0 0.0
    %526 = vmatprep.subr.mxu0 0.0
    %527 = vmatpush1.msra.mxu0 0.0
    %528 = vmatprep.subr.mxu0 0.0
    %529 = vmatpush1.msra.mxu0 0.0
    %530 = vmatprep.subr.mxu0 0.0
    %531 = vmatpush1.msra.mxu0 0.0
    %532 = vmatprep.subr.mxu0 0.0
    %533 = vmatpush1.msra.mxu0 0.0
    %534 = vmatprep.subr.mxu0 0.0
    %535 = vmatpush1.msra.mxu0 0.0
    %536 = vmatprep.subr.mxu0 0.0
    %537 = vmatpush1.msra.mxu0 0.0
    %538 = vmatprep.subr.mxu0 0.0
    %539 = vmatpush1.msra.mxu0 0.0
    %540 = vmatprep.subr.mxu0 0.0
    %541 = vmatpush1.msra.mxu0 0.0
    %542 = vmatprep.mubr.f32.mxu0 0.0
    %543 = vmatmul.mubr.f32.gmra.mrb[0].mxu0 %v469
    %v544 = vpop.f32.mrb[0].mxu0
    %v545 = vadd.f32 0.0, %v544
    %v546 = vpop.f32.mrb[0].mxu0
    %v547 = vadd.f32 0.0, %v546
    %548 = vdwg.mxu0
    %549 = vmatprep.subr.mxu0 0.0
    %550 = vmatpush1.msra.mxu0 %v476
    %551 = vmatprep.subr.mxu0 0.0
    %552 = vmatpush1.msra.mxu0 0.0
    %553 = vmatprep.subr.mxu0 0.0
    %554 = vmatpush1.msra.mxu0 0.0
    %555 = vmatprep.subr.mxu0 0.0
    %556 = vmatpush1.msra.mxu0 0.0
    %557 = vmatprep.subr.mxu0 0.0
    %558 = vmatpush1.msra.mxu0 0.0
    %559 = vmatprep.subr.mxu0 0.0
    %560 = vmatpush1.msra.mxu0 0.0
    %561 = vmatprep.subr.mxu0 0.0
    %562 = vmatpush1.msra.mxu0 0.0
    %563 = vmatprep.subr.mxu0 0.0
    %564 = vmatpush1.msra.mxu0 0.0
    %565 = vmatprep.subr.mxu0 0.0
    %566 = vmatpush1.msra.mxu0 0.0
    %567 = vmatprep.subr.mxu0 0.0
    %568 = vmatpush1.msra.mxu0 0.0
    %569 = vmatprep.subr.mxu0 0.0
    %570 = vmatpush1.msra.mxu0 0.0
    %571 = vmatprep.subr.mxu0 0.0
    %572 = vmatpush1.msra.mxu0 0.0
    %573 = vmatprep.subr.mxu0 0.0
    %574 = vmatpush1.msra.mxu0 0.0
    %575 = vmatprep.subr.mxu0 0.0
    %576 = vmatpush1.msra.mxu0 0.0
    %577 = vmatprep.subr.mxu0 0.0
    %578 = vmatpush1.msra.mxu0 0.0
    %579 = vmatprep.subr.mxu0 0.0
    %580 = vmatpush1.msra.mxu0 0.0
    %581 = vmatprep.subr.mxu0 0.0
    %582 = vmatpush1.msra.mxu0 0.0
    %583 = vmatprep.subr.mxu0 0.0
    %584 = vmatpush1.msra.mxu0 0.0
    %585 = vmatprep.subr.mxu0 0.0
    %586 = vmatpush1.msra.mxu0 0.0
    %587 = vmatprep.subr.mxu0 0.0
    %588 = vmatpush1.msra.mxu0 0.0
    %589 = vmatprep.subr.mxu0 0.0
    %590 = vmatpush1.msra.mxu0 0.0
    %591 = vmatprep.subr.mxu0 0.0
    %592 = vmatpush1.msra.mxu0 0.0
    %593 = vmatprep.subr.mxu0 0.0
    %594 = vmatpush1.msra.mxu0 0.0
    %595 = vmatprep.subr.mxu0 0.0
    %596 = vmatpush1.msra.mxu0 0.0
    %597 = vmatprep.subr.mxu0 0.0
    %598 = vmatpush1.msra.mxu0 0.0
    %599 = vmatprep.subr.mxu0 0.0
    %600 = vmatpush1.msra.mxu0 0.0
    %601 = vmatprep.subr.mxu0 0.0
    %602 = vmatpush1.msra.mxu0 0.0
    %603 = vmatprep.subr.mxu0 0.0
    %604 = vmatpush1.msra.mxu0 0.0
    %605 = vmatprep.subr.mxu0 0.0
    %606 = vmatpush1.msra.mxu0 0.0
    %607 = vmatprep.subr.mxu0 0.0
    %608 = vmatpush1.msra.mxu0 0.0
    %609 = vmatprep.subr.mxu0 0.0
    %610 = vmatpush1.msra.mxu0 0.0
    %611 = vmatprep.subr.mxu0 0.0
    %612 = vmatpush1.msra.mxu0 0.0
    %613 = vmatprep.mubr.f32.mxu0 0.0
    %614 = vmatmul.mubr.f32.gmra.mrb[0].mxu0 %v469
    %v615 = vpop.f32.mrb[0].mxu0
    %v616 = vadd.f32 0.0, %v615
    %v617 = vpop.f32.mrb[0].mxu0
    %618 = vdwg.mxu0
    %619 = vmatprep.subr.mxu0 %v270
    %620 = vmatpush1.msra.mxu0 %v269
    %621 = vmatprep.subr.mxu0 %v273
    %622 = vmatpush1.msra.mxu0 %v272
    %623 = vmatprep.subr.mxu0 %v276
    %624 = vmatpush1.msra.mxu0 %v275
    %625 = vmatprep.subr.mxu0 %v279
    %626 = vmatpush1.msra.mxu0 %v278
    %627 = vmatprep.subr.mxu0 %v282
    %628 = vmatpush1.msra.mxu0 %v281
    %629 = vmatprep.subr.mxu0 %v285
    %630 = vmatpush1.msra.mxu0 %v284
    %631 = vmatprep.subr.mxu0 %v288
    %632 = vmatpush1.msra.mxu0 %v287
    %633 = vmatprep.subr.mxu0 %v291
    %634 = vmatpush1.msra.mxu0 %v290
    %635 = vmatprep.subr.mxu0 %v294
    %636 = vmatpush1.msra.mxu0 %v293
    %637 = vmatprep.subr.mxu0 %v297
    %638 = vmatpush1.msra.mxu0 %v296
    %639 = vmatprep.subr.mxu0 %v300
    %640 = vmatpush1.msra.mxu0 %v299
    %641 = vmatprep.subr.mxu0 %v303
    %642 = vmatpush1.msra.mxu0 %v302
    %643 = vmatprep.subr.mxu0 %v306
    %644 = vmatpush1.msra.mxu0 %v305
    %645 = vmatprep.subr.mxu0 %v309
    %646 = vmatpush1.msra.mxu0 %v308
    %647 = vmatprep.subr.mxu0 %v312
    %648 = vmatpush1.msra.mxu0 %v311
    %649 = vmatprep.subr.mxu0 %v315
    %650 = vmatpush1.msra.mxu0 %v314
    %651 = vmatprep.subr.mxu0 %v318
    %652 = vmatpush1.msra.mxu0 %v317
    %653 = vmatprep.subr.mxu0 %v321
    %654 = vmatpush1.msra.mxu0 %v320
    %655 = vmatprep.subr.mxu0 %v324
    %656 = vmatpush1.msra.mxu0 %v323
    %657 = vmatprep.subr.mxu0 %v327
    %658 = vmatpush1.msra.mxu0 %v326
    %659 = vmatprep.subr.mxu0 %v330
    %660 = vmatpush1.msra.mxu0 %v329
    %661 = vmatprep.subr.mxu0 %v333
    %662 = vmatpush1.msra.mxu0 %v332
    %663 = vmatprep.subr.mxu0 %v336
    %664 = vmatpush1.msra.mxu0 %v335
    %665 = vmatprep.subr.mxu0 %v339
    %666 = vmatpush1.msra.mxu0 %v338
    %667 = vmatprep.subr.mxu0 %v342
    %668 = vmatpush1.msra.mxu0 %v341
    %669 = vmatprep.subr.mxu0 %v345
    %670 = vmatpush1.msra.mxu0 %v344
    %671 = vmatprep.subr.mxu0 %v348
    %672 = vmatpush1.msra.mxu0 %v347
    %673 = vmatprep.subr.mxu0 %v351
    %674 = vmatpush1.msra.mxu0 %v350
    %675 = vmatprep.subr.mxu0 %v354
    %676 = vmatpush1.msra.mxu0 %v353
    %677 = vmatprep.subr.mxu0 %v357
    %678 = vmatpush1.msra.mxu0 %v356
    %679 = vmatprep.subr.mxu0 %v360
    %680 = vmatpush1.msra.mxu0 %v359
    %681 = vmatprep.subr.mxu0 %v363
    %682 = vmatpush1.msra.mxu0 %v362
    %683 = vmatprep.mubr.f32.mxu0 %v266
    %684 = vmatmul.mubr.f32.gmra.mrb[0].mxu0 %v265
    %v685 = vpop.f32.mrb[0].mxu0
    %v686 = vadd.f32 %v545, %v685
    %v687 = vpop.f32.mrb[0].mxu0
    %v688 = vadd.f32 %v547, %v687
    %689 = vdwg.mxu0
    %690 = vmatprep.subr.mxu0 %v366
    %691 = vmatpush1.msra.mxu0 %v365
    %692 = vmatprep.subr.mxu0 %v369
    %693 = vmatpush1.msra.mxu0 %v368
    %694 = vmatprep.subr.mxu0 %v372
    %695 = vmatpush1.msra.mxu0 %v371
    %696 = vmatprep.subr.mxu0 %v375
    %697 = vmatpush1.msra.mxu0 %v374
    %698 = vmatprep.subr.mxu0 %v378
    %699 = vmatpush1.msra.mxu0 %v377
    %700 = vmatprep.subr.mxu0 %v381
    %701 = vmatpush1.msra.mxu0 %v380
    %702 = vmatprep.subr.mxu0 %v384
    %703 = vmatpush1.msra.mxu0 %v383
    %704 = vmatprep.subr.mxu0 %v387
    %705 = vmatpush1.msra.mxu0 %v386
    %706 = vmatprep.subr.mxu0 %v390
    %707 = vmatpush1.msra.mxu0 %v389
    %708 = vmatprep.subr.mxu0 %v393
    %709 = vmatpush1.msra.mxu0 %v392
    %710 = vmatprep.subr.mxu0 %v396
    %711 = vmatpush1.msra.mxu0 %v395
    %712 = vmatprep.subr.mxu0 %v399
    %713 = vmatpush1.msra.mxu0 %v398
    %714 = vmatprep.subr.mxu0 %v402
    %715 = vmatpush1.msra.mxu0 %v401
    %716 = vmatprep.subr.mxu0 %v405
    %717 = vmatpush1.msra.mxu0 %v404
    %718 = vmatprep.subr.mxu0 %v408
    %719 = vmatpush1.msra.mxu0 %v407
    %720 = vmatprep.subr.mxu0 %v411
    %721 = vmatpush1.msra.mxu0 %v410
    %722 = vmatprep.subr.mxu0 %v414
    %723 = vmatpush1.msra.mxu0 %v413
    %724 = vmatprep.subr.mxu0 %v417
    %725 = vmatpush1.msra.mxu0 %v416
    %726 = vmatprep.subr.mxu0 %v420
    %727 = vmatpush1.msra.mxu0 %v419
    %728 = vmatprep.subr.mxu0 %v423
    %729 = vmatpush1.msra.mxu0 %v422
    %730 = vmatprep.subr.mxu0 %v426
    %731 = vmatpush1.msra.mxu0 %v425
    %732 = vmatprep.subr.mxu0 %v429
    %733 = vmatpush1.msra.mxu0 %v428
    %734 = vmatprep.subr.mxu0 %v432
    %735 = vmatpush1.msra.mxu0 %v431
    %736 = vmatprep.subr.mxu0 %v435
    %737 = vmatpush1.msra.mxu0 %v434
    %738 = vmatprep.subr.mxu0 %v438
    %739 = vmatpush1.msra.mxu0 %v437
    %740 = vmatprep.subr.mxu0 %v441
    %741 = vmatpush1.msra.mxu0 %v440
    %742 = vmatprep.subr.mxu0 %v444
    %743 = vmatpush1.msra.mxu0 %v443
    %744 = vmatprep.subr.mxu0 %v447
    %745 = vmatpush1.msra.mxu0 %v446
    %746 = vmatprep.subr.mxu0 %v450
    %747 = vmatpush1.msra.mxu0 %v449
    %748 = vmatprep.subr.mxu0 %v453
    %749 = vmatpush1.msra.mxu0 %v452
    %750 = vmatprep.subr.mxu0 %v456
    %751 = vmatpush1.msra.mxu0 %v455
    %752 = vmatprep.subr.mxu0 %v459
    %753 = vmatpush1.msra.mxu0 %v458
    %754 = vmatprep.mubr.f32.mxu0 %v268
    %755 = vmatmul.mubr.f32.gmra.mrb[0].mxu0 %v267
    %v756 = vpop.f32.mrb[0].mxu0
    %v757 = vadd.f32 %v686, %v756
    %v758 = vpop.f32.mrb[0].mxu0
    %v759 = vadd.f32 %v688, %v758
    %760 = vdwg.mxu0
    %761 = vmatprep.subr.mxu0 0.0
    %762 = vmatpush1.msra.mxu0 %v271
    %763 = vmatprep.subr.mxu0 0.0
    %764 = vmatpush1.msra.mxu0 %v274
    %765 = vmatprep.subr.mxu0 0.0
    %766 = vmatpush1.msra.mxu0 %v277
    %767 = vmatprep.subr.mxu0 0.0
    %768 = vmatpush1.msra.mxu0 %v280
    %769 = vmatprep.subr.mxu0 0.0
    %770 = vmatpush1.msra.mxu0 %v283
    %771 = vmatprep.subr.mxu0 0.0
    %772 = vmatpush1.msra.mxu0 %v286
    %773 = vmatprep.subr.mxu0 0.0
    %774 = vmatpush1.msra.mxu0 %v289
    %775 = vmatprep.subr.mxu0 0.0
    %776 = vmatpush1.msra.mxu0 %v292
    %777 = vmatprep.subr.mxu0 0.0
    %778 = vmatpush1.msra.mxu0 %v295
    %779 = vmatprep.subr.mxu0 0.0
    %780 = vmatpush1.msra.mxu0 %v298
    %781 = vmatprep.subr.mxu0 0.0
    %782 = vmatpush1.msra.mxu0 %v301
    %783 = vmatprep.subr.mxu0 0.0
    %784 = vmatpush1.msra.mxu0 %v304
    %785 = vmatprep.subr.mxu0 0.0
    %786 = vmatpush1.msra.mxu0 %v307
    %787 = vmatprep.subr.mxu0 0.0
    %788 = vmatpush1.msra.mxu0 %v310
    %789 = vmatprep.subr.mxu0 0.0
    %790 = vmatpush1.msra.mxu0 %v313
    %791 = vmatprep.subr.mxu0 0.0
    %792 = vmatpush1.msra.mxu0 %v316
    %793 = vmatprep.subr.mxu0 0.0
    %794 = vmatpush1.msra.mxu0 %v319
    %795 = vmatprep.subr.mxu0 0.0
    %796 = vmatpush1.msra.mxu0 %v322
    %797 = vmatprep.subr.mxu0 0.0
    %798 = vmatpush1.msra.mxu0 %v325
    %799 = vmatprep.subr.mxu0 0.0
    %800 = vmatpush1.msra.mxu0 %v328
    %801 = vmatprep.subr.mxu0 0.0
    %802 = vmatpush1.msra.mxu0 %v331
    %803 = vmatprep.subr.mxu0 0.0
    %804 = vmatpush1.msra.mxu0 %v334
    %805 = vmatprep.subr.mxu0 0.0
    %806 = vmatpush1.msra.mxu0 %v337
    %807 = vmatprep.subr.mxu0 0.0
    %808 = vmatpush1.msra.mxu0 %v340
    %809 = vmatprep.subr.mxu0 0.0
    %810 = vmatpush1.msra.mxu0 %v343
    %811 = vmatprep.subr.mxu0 0.0
    %812 = vmatpush1.msra.mxu0 %v346
    %813 = vmatprep.subr.mxu0 0.0
    %814 = vmatpush1.msra.mxu0 %v349
    %815 = vmatprep.subr.mxu0 0.0
    %816 = vmatpush1.msra.mxu0 %v352
    %817 = vmatprep.subr.mxu0 0.0
    %818 = vmatpush1.msra.mxu0 %v355
    %819 = vmatprep.subr.mxu0 0.0
    %820 = vmatpush1.msra.mxu0 %v358
    %821 = vmatprep.subr.mxu0 0.0
    %822 = vmatpush1.msra.mxu0 %v361
    %823 = vmatprep.subr.mxu0 0.0
    %824 = vmatpush1.msra.mxu0 %v364
    %825 = vmatprep.mubr.f32.mxu0 %v266
    %826 = vmatmul.mubr.f32.gmra.mrb[0].mxu0 %v265
    %v827 = vpop.f32.mrb[0].mxu0
    %v828 = vadd.f32 %v616, %v827
    %v829 = vpop.f32.mrb[0].mxu0
    %830 = vdwg.mxu0
    %831 = vmatprep.subr.mxu0 0.0
    %832 = vmatpush1.msra.mxu0 %v367
    %833 = vmatprep.subr.mxu0 0.0
    %834 = vmatpush1.msra.mxu0 %v370
    %835 = vmatprep.subr.mxu0 0.0
    %836 = vmatpush1.msra.mxu0 %v373
    %837 = vmatprep.subr.mxu0 0.0
    %838 = vmatpush1.msra.mxu0 %v376
    %839 = vmatprep.subr.mxu0 0.0
    %840 = vmatpush1.msra.mxu0 %v379
    %841 = vmatprep.subr.mxu0 0.0
    %842 = vmatpush1.msra.mxu0 %v382
    %843 = vmatprep.subr.mxu0 0.0
    %844 = vmatpush1.msra.mxu0 %v385
    %845 = vmatprep.subr.mxu0 0.0
    %846 = vmatpush1.msra.mxu0 %v388
    %847 = vmatprep.subr.mxu0 0.0
    %848 = vmatpush1.msra.mxu0 %v391
    %849 = vmatprep.subr.mxu0 0.0
    %850 = vmatpush1.msra.mxu0 %v394
    %851 = vmatprep.subr.mxu0 0.0
    %852 = vmatpush1.msra.mxu0 %v397
    %853 = vmatprep.subr.mxu0 0.0
    %854 = vmatpush1.msra.mxu0 %v400
    %855 = vmatprep.subr.mxu0 0.0
    %856 = vmatpush1.msra.mxu0 %v403
    %857 = vmatprep.subr.mxu0 0.0
    %858 = vmatpush1.msra.mxu0 %v406
    %859 = vmatprep.subr.mxu0 0.0
    %860 = vmatpush1.msra.mxu0 %v409
    %861 = vmatprep.subr.mxu0 0.0
    %862 = vmatpush1.msra.mxu0 %v412
    %863 = vmatprep.subr.mxu0 0.0
    %864 = vmatpush1.msra.mxu0 %v415
    %865 = vmatprep.subr.mxu0 0.0
    %866 = vmatpush1.msra.mxu0 %v418
    %867 = vmatprep.subr.mxu0 0.0
    %868 = vmatpush1.msra.mxu0 %v421
    %869 = vmatprep.subr.mxu0 0.0
    %870 = vmatpush1.msra.mxu0 %v424
    %871 = vmatprep.subr.mxu0 0.0
    %872 = vmatpush1.msra.mxu0 %v427
    %873 = vmatprep.subr.mxu0 0.0
    %874 = vmatpush1.msra.mxu0 %v430
    %875 = vmatprep.subr.mxu0 0.0
    %876 = vmatpush1.msra.mxu0 %v433
    %877 = vmatprep.subr.mxu0 0.0
    %878 = vmatpush1.msra.mxu0 %v436
    %879 = vmatprep.subr.mxu0 0.0
    %880 = vmatpush1.msra.mxu0 %v439
    %881 = vmatprep.subr.mxu0 0.0
    %882 = vmatpush1.msra.mxu0 %v442
    %883 = vmatprep.subr.mxu0 0.0
    %884 = vmatpush1.msra.mxu0 %v445
    %885 = vmatprep.subr.mxu0 0.0
    %886 = vmatpush1.msra.mxu0 %v448
    %887 = vmatprep.subr.mxu0 0.0
    %888 = vmatpush1.msra.mxu0 %v451
    %889 = vmatprep.subr.mxu0 0.0
    %890 = vmatpush1.msra.mxu0 %v454
    %891 = vmatprep.subr.mxu0 0.0
    %892 = vmatpush1.msra.mxu0 %v457
    %893 = vmatprep.subr.mxu0 0.0
    %894 = vmatpush1.msra.mxu0 %v460
    %895 = vmatprep.mubr.f32.mxu0 %v268
    %896 = vmatmul.mubr.f32.gmra.mrb[0].mxu0 %v267
    %v897 = vpop.f32.mrb[0].mxu0
    %v898 = vadd.f32 %v828, %v897
    %v899 = vpop.f32.mrb[0].mxu0
    %900 = vdwg.mxu0
    %v901 = vld [vmem:[%s6] sm:$0x7]
    %v903 = vlaneseq
    %v904 = vshrl.u32 %v903, 7
    %v905 = vsub.s32 0, %v904
    %v906 = vrot.slane %v901, %v905
    %v907 = vlaneseq
    %v908 = vshrl.u32 %v907, 7
    %v909 = vsub.s32 1, %v908
    %v910 = vrot.slane %v901, %v909
    %v911 = vlaneseq
    %v912 = vshrl.u32 %v911, 7
    %v913 = vsub.s32 2, %v912
    %v914 = vrot.slane %v901, %v913
    %v918 = vadd.f32 %v757, %v906
    %v919 = vadd.f32 %v759, %v910
    %v920 = vadd.f32 %v898, %v914
    %v921 = vmax.f32 %v918, 0.0
    %v922 = vmax.f32 %v919, 0.0
    %v923 = vmax.f32 %v920, 0.0
    %v924 = vld [vmem:[%s7] sm:$0x7]
    %v925 = vld [vmem:[#allocation2] sm:$0x1]
    %927 = vset.pattern.permute.xlu0 0
    %928 = vperm.xlu0 %927, %v925
    %v929 = vpop.permute.xlu0 %928
    %v931 = vlaneseq
    %v932 = vshrl.u32 %v931, 7
    %v933 = vsub.s32 0, %v932
    %v934 = vrot.slane %v929, %v933
    %v936 = vlaneseq
    %v937 = vshrl.u32 %v936, 7
    %v938 = vsub.s32 0, %v937
    %v939 = vrot.slane %v924, %v938
    %v940 = vlaneseq
    %v941 = vshrl.u32 %v940, 7
    %v942 = vsub.s32 1, %v941
    %v943 = vrot.slane %v924, %v942
    %v944 = vlaneseq
    %v945 = vshrl.u32 %v944, 7
    %v946 = vsub.s32 2, %v945
    %v947 = vrot.slane %v924, %v946
    %951 = vmatprep.subr.mxu0 %v922
    %952 = vmatpush1.xpose.msra.mxu0 %v921
    %953 = vmatprep.subr.mxu0 0.0
    %954 = vmatpush1.xpose.msra.mxu0 0.0
    %955 = vmatprep.subr.mxu0 0.0
    %956 = vmatpush1.xpose.msra.mxu0 0.0
    %957 = vmatprep.subr.mxu0 0.0
    %958 = vmatpush1.xpose.msra.mxu0 0.0
    %959 = vmatprep.subr.mxu0 0.0
    %960 = vmatpush1.xpose.msra.mxu0 0.0
    %961 = vmatprep.subr.mxu0 0.0
    %962 = vmatpush1.xpose.msra.mxu0 0.0
    %963 = vmatprep.subr.mxu0 0.0
    %964 = vmatpush1.xpose.msra.mxu0 0.0
    %965 = vmatprep.subr.mxu0 0.0
    %966 = vmatpush1.xpose.msra.mxu0 0.0
    %967 = vmatprep.subr.mxu0 0.0
    %968 = vmatpush1.xpose.msra.mxu0 0.0
    %969 = vmatprep.subr.mxu0 0.0
    %970 = vmatpush1.xpose.msra.mxu0 0.0
    %971 = vmatprep.subr.mxu0 0.0
    %972 = vmatpush1.xpose.msra.mxu0 0.0
    %973 = vmatprep.subr.mxu0 0.0
    %974 = vmatpush1.xpose.msra.mxu0 0.0
    %975 = vmatprep.subr.mxu0 0.0
    %976 = vmatpush1.xpose.msra.mxu0 0.0
    %977 = vmatprep.subr.mxu0 0.0
    %978 = vmatpush1.xpose.msra.mxu0 0.0
    %979 = vmatprep.subr.mxu0 0.0
    %980 = vmatpush1.xpose.msra.mxu0 0.0
    %981 = vmatprep.subr.mxu0 0.0
    %982 = vmatpush1.xpose.msra.mxu0 0.0
    %983 = vmatprep.subr.mxu0 0.0
    %984 = vmatpush1.xpose.msra.mxu0 0.0
    %985 = vmatprep.subr.mxu0 0.0
    %986 = vmatpush1.xpose.msra.mxu0 0.0
    %987 = vmatprep.subr.mxu0 0.0
    %988 = vmatpush1.xpose.msra.mxu0 0.0
    %989 = vmatprep.subr.mxu0 0.0
    %990 = vmatpush1.xpose.msra.mxu0 0.0
    %991 = vmatprep.subr.mxu0 0.0
    %992 = vmatpush1.xpose.msra.mxu0 0.0
    %993 = vmatprep.subr.mxu0 0.0
    %994 = vmatpush1.xpose.msra.mxu0 0.0
    %995 = vmatprep.subr.mxu0 0.0
    %996 = vmatpush1.xpose.msra.mxu0 0.0
    %997 = vmatprep.subr.mxu0 0.0
    %998 = vmatpush1.xpose.msra.mxu0 0.0
    %999 = vmatprep.subr.mxu0 0.0
    %1000 = vmatpush1.xpose.msra.mxu0 0.0
    %1001 = vmatprep.subr.mxu0 0.0
    %1002 = vmatpush1.xpose.msra.mxu0 0.0
    %1003 = vmatprep.subr.mxu0 0.0
    %1004 = vmatpush1.xpose.msra.mxu0 0.0
    %1005 = vmatprep.subr.mxu0 0.0
    %1006 = vmatpush1.xpose.msra.mxu0 0.0
    %1007 = vmatprep.subr.mxu0 0.0
    %1008 = vmatpush1.xpose.msra.mxu0 0.0
    %1009 = vmatprep.subr.mxu0 0.0
    %1010 = vmatpush1.xpose.msra.mxu0 0.0
    %1011 = vmatprep.subr.mxu0 0.0
    %1012 = vmatpush1.xpose.msra.mxu0 0.0
    %1013 = vmatprep.subr.mxu0 0.0
    %1014 = vmatpush1.xpose.msra.mxu0 0.0
    %1015 = vmatprep.mubr.f32.mxu0 %v943
    %1016 = vmatmul.mubr.f32.gmra.mrb[0].mxu0 %v939
    %v1017 = vpop.f32.mrb[0].mxu0
    %v1018 = vadd.f32 %v934, %v1017
    %v1019 = vpop.f32.mrb[0].mxu0
    %1020 = vdwg.mxu0
    %1021 = vmatprep.subr.mxu0 0.0
    %1022 = vmatpush1.xpose.msra.mxu0 %v923
    %1023 = vmatprep.subr.mxu0 0.0
    %1024 = vmatpush1.xpose.msra.mxu0 0.0
    %1025 = vmatprep.subr.mxu0 0.0
    %1026 = vmatpush1.xpose.msra.mxu0 0.0
    %1027 = vmatprep.subr.mxu0 0.0
    %1028 = vmatpush1.xpose.msra.mxu0 0.0
    %1029 = vmatprep.subr.mxu0 0.0
    %1030 = vmatpush1.xpose.msra.mxu0 0.0
    %1031 = vmatprep.subr.mxu0 0.0
    %1032 = vmatpush1.xpose.msra.mxu0 0.0
    %1033 = vmatprep.subr.mxu0 0.0
    %1034 = vmatpush1.xpose.msra.mxu0 0.0
    %1035 = vmatprep.subr.mxu0 0.0
    %1036 = vmatpush1.xpose.msra.mxu0 0.0
    %1037 = vmatprep.subr.mxu0 0.0
    %1038 = vmatpush1.xpose.msra.mxu0 0.0
    %1039 = vmatprep.subr.mxu0 0.0
    %1040 = vmatpush1.xpose.msra.mxu0 0.0
    %1041 = vmatprep.subr.mxu0 0.0
    %1042 = vmatpush1.xpose.msra.mxu0 0.0
    %1043 = vmatprep.subr.mxu0 0.0
    %1044 = vmatpush1.xpose.msra.mxu0 0.0
    %1045 = vmatprep.subr.mxu0 0.0
    %1046 = vmatpush1.xpose.msra.mxu0 0.0
    %1047 = vmatprep.subr.mxu0 0.0
    %1048 = vmatpush1.xpose.msra.mxu0 0.0
    %1049 = vmatprep.subr.mxu0 0.0
    %1050 = vmatpush1.xpose.msra.mxu0 0.0
    %1051 = vmatprep.subr.mxu0 0.0
    %1052 = vmatpush1.xpose.msra.mxu0 0.0
    %1053 = vmatprep.subr.mxu0 0.0
    %1054 = vmatpush1.xpose.msra.mxu0 0.0
    %1055 = vmatprep.subr.mxu0 0.0
    %1056 = vmatpush1.xpose.msra.mxu0 0.0
    %1057 = vmatprep.subr.mxu0 0.0
    %1058 = vmatpush1.xpose.msra.mxu0 0.0
    %1059 = vmatprep.subr.mxu0 0.0
    %1060 = vmatpush1.xpose.msra.mxu0 0.0
    %1061 = vmatprep.subr.mxu0 0.0
    %1062 = vmatpush1.xpose.msra.mxu0 0.0
    %1063 = vmatprep.subr.mxu0 0.0
    %1064 = vmatpush1.xpose.msra.mxu0 0.0
    %1065 = vmatprep.subr.mxu0 0.0
    %1066 = vmatpush1.xpose.msra.mxu0 0.0
    %1067 = vmatprep.subr.mxu0 0.0
    %1068 = vmatpush1.xpose.msra.mxu0 0.0
    %1069 = vmatprep.subr.mxu0 0.0
    %1070 = vmatpush1.xpose.msra.mxu0 0.0
    %1071 = vmatprep.subr.mxu0 0.0
    %1072 = vmatpush1.xpose.msra.mxu0 0.0
    %1073 = vmatprep.subr.mxu0 0.0
    %1074 = vmatpush1.xpose.msra.mxu0 0.0
    %1075 = vmatprep.subr.mxu0 0.0
    %1076 = vmatpush1.xpose.msra.mxu0 0.0
    %1077 = vmatprep.subr.mxu0 0.0
    %1078 = vmatpush1.xpose.msra.mxu0 0.0
    %1079 = vmatprep.subr.mxu0 0.0
    %1080 = vmatpush1.xpose.msra.mxu0 0.0
    %1081 = vmatprep.subr.mxu0 0.0
    %1082 = vmatpush1.xpose.msra.mxu0 0.0
    %1083 = vmatprep.subr.mxu0 0.0
    %1084 = vmatpush1.xpose.msra.mxu0 0.0
    %1085 = vmatprep.mubr.f32.mxu0 0.0
    %1086 = vmatmul.mubr.f32.gmra.mrb[0].mxu0 %v947
    %v1087 = vpop.f32.mrb[0].mxu0
    %v1088 = vadd.f32 %v1018, %v1087
    %v1089 = vpop.f32.mrb[0].mxu0
    %1090 = vdwg.mxu0
    %vm1091 = vcmask 57344
    %1092 = vst.msk [vmem:[#allocation8] sm:$0x1] %vm1091, %v1088
    // Predicated region
    $region46: #{tpu_custom_call.1} parent=1 // pred_check
      _
    $region47: #{tpu_custom_call.1} parent=1 // pred_check_branch
      %1094 = sbr.rel (0) target = $region49
    $region48: #{tpu_custom_call.1} parent=1 // pred_region
      %s1096 = ssub.s32 16, 16
      %1097 = vsyncadd [#allocation5], %s1096
      %s1099 = sshll.u32 [#allocation8], 4
      %s1100 = int_to_ptr.vmem [resolvable:$true] %s1099
      %1102 = dma.vmem_to_hbm [thread:$0]  %s1100, 16, %s9, [#allocation5]
    $region49: #{tpu_custom_call.1} parent=1 // pred_fallthru
      _
    // Predicated region
    $region50: #{tpu_custom_call.1} parent=1 // pred_check
      _
    $region51: #{tpu_custom_call.1} parent=1 // pred_check_branch
      %1104 = sbr.rel (0) target = $region53
    $region52: #{tpu_custom_call.1} parent=1 // pred_region
      %1105 = dma.done [#allocation5], 16
    $region53: #{tpu_custom_call.1} parent=1 // pred_fallthru
      _
    %1106 = vsyncpa [#allocation4], 1
    %1107 = vsyncpa [#allocation7], 1
    %1108 = vsyncpa [#allocation5], 1

</llo_original>
